<compile_context>
chip_gen: v6e
topology: v6e:2x2x1
jax: 0.10.0
libtpu: 0.0.40
codegen_flags: <defaults>
</compile_context>

<pallas_src>
import functools

import jax
import jax.numpy as jnp
from jax.experimental import pallas as pl
from jax.experimental.pallas import tpu as pltpu

# Conservative working-set budget used for tile sizing (fits the scoped-VMEM
# default on every generation: 16 MiB v5e, 32 MiB v6e/v7x).
_VMEM_BUDGET = 14 * 1024 * 1024
# Explicit scoped-VMEM limit handed to Mosaic (well under v7x's 64 MiB VMEM).
_VMEM_LIMIT = 48 * 1024 * 1024


def _round_up(x, m):
    return ((x + m - 1) // m) * m


def _sublane_step(dtype):
    """Row-tile step for this dtype: 8 for f32, 16 for bf16, 32 for int8/fp8."""
    return max(8, 32 // jnp.dtype(dtype).itemsize)


def _lane_tile(dim, pref=512):
    """Largest 128-multiple <= pref that divides `dim` (dim already 128-padded)."""
    t = min(pref, dim)
    t -= t % 128
    while t > 128 and dim % t:
        t -= 128
    return max(t, 128)


def _pad2d(x, rows, cols):
    r, c = x.shape
    if r == rows and c == cols:
        return x
    return jnp.pad(x, ((0, rows - r), (0, cols - c)))


# ---------------------------------------------------------------------------
# Kernels:  Y = (X @ W + b) * scale   (concat / sum / mean paths)
# ---------------------------------------------------------------------------
def _linear_resident_kernel(x_ref, w_ref, b_ref, o_ref, *, scale):
    # W/b are resident (constant block index): one matmul per row tile.
    y = jnp.dot(x_ref[...], w_ref[...], preferred_element_type=jnp.float32)
    y = y + b_ref[...].astype(jnp.float32)
    if scale != 1.0:
        y = y * scale
    o_ref[...] = y.astype(o_ref.dtype)


def _linear_tiled_kernel(x_ref, w_ref, b_ref, o_ref, *scratch, scale):
    # 3-D grid (rows, out-lanes, K). Accumulate directly in o_ref when f32,
    # otherwise in the f32 scratch.
    acc_ref = scratch[0] if scratch else o_ref
    k = pl.program_id(2)

    @pl.when(k == 0)
    def _():
        acc_ref[...] = jnp.zeros_like(acc_ref)

    acc_ref[...] += jnp.dot(
        x_ref[...], w_ref[...], preferred_element_type=jnp.float32
    ).astype(acc_ref.dtype)

    @pl.when(k == pl.num_programs(2) - 1)
    def _():
        y = acc_ref[...].astype(jnp.float32) + b_ref[...].astype(jnp.float32)
        if scale != 1.0:
            y = y * scale
        o_ref[...] = y.astype(o_ref.dtype)


def _tiled_linear(X, W2d, b1d, scale, out_dtype):
    N, D_in = X.shape
    _, D_out = W2d.shape

    step = _sublane_step(X.dtype)
    Dk = _round_up(D_in, 128)
    Dd = _round_up(D_out, 128)

    x_it = jnp.dtype(X.dtype).itemsize
    w_it = jnp.dtype(W2d.dtype).itemsize
    o_it = jnp.dtype(out_dtype).itemsize

    Wp = _pad2d(W2d, Dk, Dd)
    bp = _pad2d(b1d.reshape(1, D_out), 1, Dd)

    # ---- Fast path: full weight slab resident in VMEM, 1-D grid over rows ----
    w_bytes = 2 * Dk * Dd * w_it                       # conservative (x2 buffering)
    per_row = 2 * Dk * x_it + 2 * Dd * o_it            # X + out, double-buffered
    if w_bytes + per_row * step + 2 * Dd * 4 <= _VMEM_BUDGET:
        tn_cap = (_VMEM_BUDGET - w_bytes - 2 * Dd * 4) // per_row
        TN = min(512, _round_up(N, step), (tn_cap // step) * step)
        # Keep >= 2 row blocks when N allows, so v7x's second TensorCore has work.
        if TN >= N and N > 2 * step:
            TN = _round_up((N + 1) // 2, step)
        Np = _round_up(N, TN)
        Xp = _pad2d(X, Np, Dk)
        out = pl.pallas_call(
            functools.partial(_linear_resident_kernel, scale=scale),
            out_shape=jax.ShapeDtypeStruct((Np, Dd), out_dtype),
            grid_spec=pltpu.PrefetchScalarGridSpec(
                num_scalar_prefetch=0,
                grid=(Np // TN,),
                in_specs=[
                    pl.BlockSpec((TN, Dk), lambda n: (n, 0)),
                    pl.BlockSpec((Dk, Dd), lambda n: (0, 0)),   # resident weights
                    pl.BlockSpec((1, Dd), lambda n: (0, 0)),    # resident bias
                ],
                out_specs=pl.BlockSpec((TN, Dd), lambda n: (n, 0)),
            ),
            compiler_params=pltpu.CompilerParams(
                dimension_semantics=("parallel",),
                vmem_limit_bytes=_VMEM_LIMIT),
        )(Xp, Wp, bp)
        return out[:N, :D_out]

    # ---- Fallback: 3-D tiled grid for very large D_in / D_out ----
    TK = _lane_tile(Dk, 512)
    TD = _lane_tile(Dd, 512)
    TN = 512 if N >= 512 else _round_up(N, step)
    Np = _round_up(N, TN)
    Xp = _pad2d(X, Np, Dk)

    use_scratch = jnp.dtype(out_dtype) != jnp.float32
    scratch = [pltpu.VMEM((TN, TD), jnp.float32)] if use_scratch else []
    # TODO(synk): consider pipeline_mode=pl.Buffered(3) on the W spec for v5e if
    # profiling shows exposed DMA in the K loop.
    out = pl.pallas_call(
        functools.partial(_linear_tiled_kernel, scale=scale),
        out_shape=jax.ShapeDtypeStruct((Np, Dd), out_dtype),
        grid_spec=pltpu.PrefetchScalarGridSpec(
            num_scalar_prefetch=0,
            grid=(Np // TN, Dd // TD, Dk // TK),
            in_specs=[
                pl.BlockSpec((TN, TK), lambda n, j, k: (n, k)),
                pl.BlockSpec((TK, TD), lambda n, j, k: (k, j)),
                pl.BlockSpec((1, TD), lambda n, j, k: (0, j)),
            ],
            out_specs=pl.BlockSpec((TN, TD), lambda n, j, k: (n, j)),
            scratch_shapes=scratch,
        ),
        compiler_params=pltpu.CompilerParams(
            dimension_semantics=("parallel", "parallel", "arbitrary"),
            vmem_limit_bytes=_VMEM_LIMIT),
    )(Xp, Wp, bp)
    return out[:N, :D_out]


# ---------------------------------------------------------------------------
# Max readout: folded-head matmul + f32 max over static lane slices
# ---------------------------------------------------------------------------
def _max_resident_kernel(x_ref, w_ref, b_ref, o_ref, *, num_heads, d_head):
    y = jnp.dot(x_ref[...], w_ref[...], preferred_element_type=jnp.float32)
    y = y + b_ref[...].astype(jnp.float32)
    m = y[:, :d_head]
    for h in range(1, num_heads):                       # static, lane-aligned slices
        m = jnp.maximum(m, y[:, h * d_head:(h + 1) * d_head])
    o_ref[...] = m.astype(o_ref.dtype)


def _max_ktiled_kernel(x_ref, w_ref, b_ref, o_ref, acc_ref, *, num_heads, d_head):
    k = pl.program_id(1)

    @pl.when(k == 0)
    def _():
        acc_ref[...] = jnp.zeros_like(acc_ref)

    acc_ref[...] += jnp.dot(x_ref[...], w_ref[...],
                            preferred_element_type=jnp.float32)

    @pl.when(k == pl.num_programs(1) - 1)
    def _():
        y = acc_ref[...] + b_ref[...].astype(jnp.float32)
        m = y[:, :d_head]
        for h in range(1, num_heads):
            m = jnp.maximum(m, y[:, h * d_head:(h + 1) * d_head])
        o_ref[...] = m.astype(o_ref.dtype)


def _max_readout(X, W, b):
    N, D_in = X.shape
    H, _, D_out = W.shape
    out_dtype = X.dtype

    step = _sublane_step(X.dtype)
    Dk = _round_up(D_in, 128)
    Ddo = _round_up(D_out, 128)        # per-head padded -> 128-aligned lane slices
    HDd = H * Ddo

    # Fold heads into the lane axis (zero-padded per head; pads never win the max
    # because they are sliced off before returning).
    W_pad = jnp.pad(W, ((0, 0), (0, Dk - D_in), (0, Ddo - D_out)))
    Wp = jnp.transpose(W_pad, (1, 0, 2)).reshape(Dk, HDd)
    bp = jnp.pad(b, ((0, 0), (0, Ddo - D_out))).reshape(1, HDd)

    x_it = jnp.dtype(X.dtype).itemsize
    w_it = jnp.dtype(W.dtype).itemsize
    o_it = jnp.dtype(out_dtype).itemsize

    # ---- Fast path: resident folded weights, fused per-head max ----
    w_bytes = 2 * Dk * HDd * w_it
    per_row = 2 * Dk * x_it + 2 * Ddo * o_it
    if w_bytes + per_row * step + 2 * HDd * 4 <= _VMEM_BUDGET:
        tn_cap = (_VMEM_BUDGET - w_bytes - 2 * HDd * 4) // per_row
        TN = min(512, _round_up(N, step), (tn_cap // step) * step)
        if TN >= N and N > 2 * step:
            TN = _round_up((N + 1) // 2, step)
        Np = _round_up(N, TN)
        Xp = _pad2d(X, Np, Dk)
        out = pl.pallas_call(
            functools.partial(_max_resident_kernel, num_heads=H, d_head=Ddo),
            out_shape=jax.ShapeDtypeStruct((Np, Ddo), out_dtype),
            grid_spec=pltpu.PrefetchScalarGridSpec(
                num_scalar_prefetch=0,
                grid=(Np // TN,),
                in_specs=[
                    pl.BlockSpec((TN, Dk), lambda n: (n, 0)),
                    pl.BlockSpec((Dk, HDd), lambda n: (0, 0)),
                    pl.BlockSpec((1, HDd), lambda n: (0, 0)),
                ],
                out_specs=pl.BlockSpec((TN, Ddo), lambda n: (n, 0)),
            ),
            compiler_params=pltpu.CompilerParams(
                dimension_semantics=("parallel",),
                vmem_limit_bytes=_VMEM_LIMIT),
        )(Xp, Wp, bp)
        return out[:N, :D_out]

    # ---- Fallback: K-tiled reduction with resident f32 accumulator ----
    TK = _lane_tile(Dk, 512)
    w_tile = 2 * TK * HDd * w_it
    per_row = 2 * TK * x_it + 2 * Ddo * o_it + HDd * 4
    tn_cap = max((_VMEM_BUDGET - w_tile - 2 * HDd * 4) // per_row, step)
    TN = min(512, _round_up(N, step), (tn_cap // step) * step)
    # TODO(synk): for extremely large H*D_out also tile the folded lane axis
    # (or split into a concat matmul + separate max-reduce kernel).
    Np = _round_up(N, TN)
    Xp = _pad2d(X, Np, Dk)
    out = pl.pallas_call(
        functools.partial(_max_ktiled_kernel, num_heads=H, d_head=Ddo),
        out_shape=jax.ShapeDtypeStruct((Np, Ddo), out_dtype),
        grid_spec=pltpu.PrefetchScalarGridSpec(
            num_scalar_prefetch=0,
            grid=(Np // TN, Dk // TK),
            in_specs=[
                pl.BlockSpec((TN, TK), lambda n, k: (n, k)),
                pl.BlockSpec((TK, HDd), lambda n, k: (k, 0)),
                pl.BlockSpec((1, HDd), lambda n, k: (0, 0)),
            ],
            out_specs=pl.BlockSpec((TN, Ddo), lambda n, k: (n, 0)),
            scratch_shapes=[pltpu.VMEM((TN, HDd), jnp.float32)],
        ),
        compiler_params=pltpu.CompilerParams(
            dimension_semantics=("parallel", "arbitrary"),
            vmem_limit_bytes=_VMEM_LIMIT),
    )(Xp, Wp, bp)
    return out[:N, :D_out]


# ---------------------------------------------------------------------------
# Public entry point: MultiHeadWrapper.forward with a linear inner layer
# ---------------------------------------------------------------------------
def multi_head_forward(X, W, b, readout):
    H, D_in, D_out = W.shape

    if readout == "concat":
        # concat_h (X @ W_h + b_h) == X @ [W_0 | W_1 | ...] + [b_0 | b_1 | ...]
        W_c = jnp.transpose(W, (1, 0, 2)).reshape(D_in, H * D_out)
        b_c = b.reshape(H * D_out)
        return _tiled_linear(X, W_c, b_c, 1.0, X.dtype)
    if readout in ("sum", "mean"):
        # sum_h (X @ W_h + b_h) == X @ sum_h W_h + sum_h b_h (reduce in f32).
        W_r = W.astype(jnp.float32).sum(axis=0).astype(W.dtype)
        b_r = b.astype(jnp.float32).sum(axis=0).astype(b.dtype)
        scale = (1.0 / H) if readout == "mean" else 1.0
        return _tiled_linear(X, W_r, b_r, scale, X.dtype)
    if readout == "max":
        return _max_readout(X, W, b)
    raise ValueError("Unknown readout type")


def _reference(X, W, b, readout):
    outs = jnp.stack([X @ W[h] + b[h] for h in range(W.shape[0])])
    if readout == "concat":
        return jnp.concatenate([outs[h] for h in range(W.shape[0])], axis=-1)
    if readout == "mean":
        return outs.mean(axis=0)
    if readout == "max":
        return outs.max(axis=0)
    if readout == "sum":
        return outs.sum(axis=0)
    raise ValueError


if __name__ == "__main__":
    key = jax.random.PRNGKey(0)

    def make_inputs(num_heads, N, D_in, D_out, k):
        kx, kw, kb = jax.random.split(k, 3)
        X = jax.random.normal(kx, (N, D_in), dtype=jnp.float32)
        # Deterministic per-head parameters (synthetic init, not a checkpoint).
        W = jax.random.normal(kw, (num_heads, D_in, D_out), dtype=jnp.float32) * 0.1
        b = jax.random.normal(kb, (num_heads, D_out), dtype=jnp.float32) * 0.1
        return X, W, b

    def check(X, W, b):
        for readout in ("concat", "mean", "max", "sum"):
            out = jax.block_until_ready(multi_head_forward(X, W, b, readout))
            ref = _reference(X, W, b, readout)
            assert out.shape == ref.shape, (readout, out.shape, ref.shape)
            assert jnp.allclose(out, ref, atol=2e-3, rtol=2e-3), readout

    k1, k2 = jax.random.split(key)

    # 1) lane-aligned small shapes -> resident-weight fast paths
    X1, W1, b1 = make_inputs(4, 8, 32, 128, k1)
    check(X1, W1, b1)

    # 2) ragged, non-128-aligned shapes -> exercises host-side zero padding
    X2, W2, b2 = make_inputs(3, 50, 96, 96, k2)
    check(X2, W2, b2)

    # 3) shrink the tile-sizing budget to force the tiled / K-axis fallback paths
    _VMEM_BUDGET = 64 * 1024
    check(X1, W1, b1)

    print("KERNEL_OK")
</pallas_src>

<mosaic_0001>
module attributes {stable_mosaic.version = 11 : i64} {
  func.func @_linear_resident_kernel(%arg0: i32, %arg1: memref<8x128xf32, #tpu.memory_space<vmem>>, %arg2: memref<128x512xf32, #tpu.memory_space<vmem>>, %arg3: memref<1x512xf32, #tpu.memory_space<vmem>>, %arg4: memref<8x512xf32, #tpu.memory_space<vmem>>) attributes {dimension_semantics = [#tpu.dimension_semantics<parallel>], iteration_bounds = array<i64: 1>, scalar_prefetch = 0 : i64, scratch_operands = 0 : i64, tpu.core_type = #tpu.core_type<tc>, window_params = [{transform_indices = @transform_0, window_bounds = array<i64: 8, 128>}, {pipeline_mode = #tpu.pipeline_mode<synchronous>, transform_indices = @transform_1, window_bounds = array<i64: 128, 512>}, {pipeline_mode = #tpu.pipeline_mode<synchronous>, transform_indices = @transform_2, window_bounds = array<i64: 1, 512>}, {transform_indices = @transform_3, window_bounds = array<i64: 8, 512>}]} {
    %c0 = arith.constant 0 : index
    %c0_0 = arith.constant 0 : index
    %0 = vector.load %arg1[%c0, %c0_0] : memref<8x128xf32, #tpu.memory_space<vmem>>, vector<8x128xf32>
    %c0_1 = arith.constant 0 : index
    %c0_2 = arith.constant 0 : index
    %1 = vector.load %arg2[%c0_1, %c0_2] : memref<128x512xf32, #tpu.memory_space<vmem>>, vector<128x512xf32>
    %cst = arith.constant dense<0.000000e+00> : vector<8x512xf32>
    %2 = tpu.matmul %0, %1, %cst {dimension_numbers = #tpu.dot_dimension_numbers<[1], [0], [0], [1], [0, 0, 1, 1], [], []>} : vector<8x128xf32>, vector<128x512xf32>, vector<8x512xf32> -> vector<8x512xf32>
    %c0_3 = arith.constant 0 : index
    %c0_4 = arith.constant 0 : index
    %3 = vector.load %arg3[%c0_3, %c0_4] : memref<1x512xf32, #tpu.memory_space<vmem>>, vector<1x512xf32>
    %4 = vector.broadcast %3 : vector<1x512xf32> to vector<8x512xf32>
    %5 = arith.addf %2, %4 : vector<8x512xf32>
    %c0_5 = arith.constant 0 : index
    %c0_6 = arith.constant 0 : index
    %6 = vector.load %arg4[%c0_5, %c0_6] : memref<8x512xf32, #tpu.memory_space<vmem>>, vector<8x512xf32>
    tpu.vector_store %arg4[%c0_5, %c0_6], %5 {strides = array<i32>} : memref<8x512xf32, #tpu.memory_space<vmem>>, vector<8x512xf32>,
    return
  }
  func.func @transform_0(%arg0: i32) -> (i32, i32) {
    %c0_i32 = arith.constant 0 : i32
    %c0_i32_0 = arith.constant 0 : i32
    return %arg0, %c0_i32 : i32, i32
  }
  func.func @transform_1(%arg0: i32) -> (i32, i32) {
    %c0_i32 = arith.constant 0 : i32
    %c0_i32_0 = arith.constant 0 : i32
    %c0_i32_1 = arith.constant 0 : i32
    return %c0_i32, %c0_i32_0 : i32, i32
  }
  func.func @transform_2(%arg0: i32) -> (i32, i32) {
    %c0_i32 = arith.constant 0 : i32
    %c0_i32_0 = arith.constant 0 : i32
    %c0_i32_1 = arith.constant 0 : i32
    return %c0_i32, %c0_i32_0 : i32, i32
  }
  func.func @transform_3(%arg0: i32) -> (i32, i32) {
    %c0_i32 = arith.constant 0 : i32
    %c0_i32_0 = arith.constant 0 : i32
    return %arg0, %c0_i32 : i32, i32
  }
}

</mosaic_0001>

<llo_original>
// kernel: tpu_custom_call.1
$region0: #{tpu_custom_call.1}
  #allocation0 [shape = 'u32[]', space=smem, size = 0x4, offset = 0x4, fixed_abs, tag = 'smem constant byte address 0x4 - core index']
  #allocation1 [shape = 'u32[144,128]{1,0:T(1,128)}', space=vmem, size = 0x12000, scoped, tag = 'internal scratch']
  %s0 = inlined_call_operand.hbm [shape: f32[8,128], index: 0, kind: input, shape index: {}]
  %s1 = inlined_call_operand.hbm [shape: f32[128,512], index: 1, kind: input, shape index: {}]
  %s2 = inlined_call_operand.hbm [shape: f32[1,512], index: 2, kind: input, shape index: {}]
  %s3 = inlined_call_operand.hbm [shape: f32[8,512], index: 3, kind: output, shape index: {}]
  %s4 = sld [smem:[#allocation0]]
  $region34: #{tpu_custom_call.1} parent=0
    _
  %s6 = ssub.s32 1, %s4
  %s7 = scalar_select 0, %s6, %s4
  $region1: #{tpu_custom_call.1} parent=0
    #allocation2 [shape = 'u8[4096]{0}', space=vmem, size = 0x1000, scoped, tag = 'input window, operand 0, single buffered']
    #allocation3 [shape = 's32[1]{0}', space=sflag, size = 0x4, scoped, tag = 'scoped memory for tpu_custom_call.1']
    #allocation4 [shape = 's32[1]{0}', space=sflag, size = 0x4, scoped, tag = 'scoped memory for tpu_custom_call.1']
    #allocation5 [shape = 'u8[262144]{0}', space=vmem, size = 0x40000, scoped, tag = 'input window, operand 1, single buffered']
    #allocation6 [shape = 's32[1]{0}', space=sflag, size = 0x4, scoped, tag = 'scoped memory for tpu_custom_call.1']
    #allocation7 [shape = 'u8[2048]{0}', space=vmem, size = 0x800, scoped, tag = 'input window, operand 2, single buffered']
    #allocation8 [shape = 'u8[16384]{0}', space=vmem, size = 0x4000, scoped, tag = 'output window, operand 0, single buffered']
    %8 = vsyncpa [#allocation3], 0
    %9 = vsyncpa [#allocation6], 0
    %10 = vsyncpa [#allocation4], 0
    // Predicated region
    $region2: #{tpu_custom_call.1} parent=1 // pred_check
      _
    $region3: #{tpu_custom_call.1} parent=1 // pred_check_branch
      %12 = sbr.rel (0) target = $region5
    $region4: #{tpu_custom_call.1} parent=1 // pred_region
      %s14 = ssub.s32 128, 128
      %15 = vsyncadd [#allocation3], %s14
      %s17 = sshll.u32 [#allocation2], 4
      %s18 = int_to_ptr.vmem [resolvable:$true] %s17
      %20 = dma.hbm_to_vmem [thread:$0]  %s0, 128, %s18, [#allocation3]
    $region5: #{tpu_custom_call.1} parent=1 // pred_fallthru
      _
    // Predicated region
    $region6: #{tpu_custom_call.1} parent=1 // pred_check
      _
    $region7: #{tpu_custom_call.1} parent=1 // pred_check_branch
      %22 = sbr.rel (0) target = $region9
    $region8: #{tpu_custom_call.1} parent=1 // pred_region
      %s24 = ssub.s32 8192, 8192
      %25 = vsyncadd [#allocation6], %s24
      %s26 = sshll.u32 [#allocation5], 4
      %s27 = int_to_ptr.vmem [resolvable:$true] %s26
      %32 = dma.hbm_to_vmem [thread:$0]  %s1, 8192, %s27, [#allocation6], 512, 512, 32
    $region9: #{tpu_custom_call.1} parent=1 // pred_fallthru
      _
    // Predicated region
    $region10: #{tpu_custom_call.1} parent=1 // pred_check
      _
    $region11: #{tpu_custom_call.1} parent=1 // pred_check_branch
      %34 = sbr.rel (0) target = $region13
    $region12: #{tpu_custom_call.1} parent=1 // pred_region
      %s36 = ssub.s32 64, 64
      %37 = vsyncadd [#allocation6], %s36
      %s39 = sshll.u32 [#allocation7], 4
      %s40 = int_to_ptr.vmem [resolvable:$true] %s39
      %42 = dma.hbm_to_vmem [thread:$0]  %s2, 64, %s40, [#allocation6]
    $region13: #{tpu_custom_call.1} parent=1 // pred_fallthru
      _
    // Predicated region
    $region14: #{tpu_custom_call.1} parent=1 // pred_check
      _
    $region15: #{tpu_custom_call.1} parent=1 // pred_check_branch
      %44 = sbr.rel (0) target = $region17
    $region16: #{tpu_custom_call.1} parent=1 // pred_region
      %45 = dma.done [#allocation3], 128
    $region17: #{tpu_custom_call.1} parent=1 // pred_fallthru
      _
    // Predicated region
    $region18: #{tpu_custom_call.1} parent=1 // pred_check
      _
    $region19: #{tpu_custom_call.1} parent=1 // pred_check_branch
      %47 = sbr.rel (0) target = $region21
    $region20: #{tpu_custom_call.1} parent=1 // pred_region
      %48 = dma.done [#allocation6], 8192
    $region21: #{tpu_custom_call.1} parent=1 // pred_fallthru
      _
    // Predicated region
    $region22: #{tpu_custom_call.1} parent=1 // pred_check
      _
    $region23: #{tpu_custom_call.1} parent=1 // pred_check_branch
      %50 = sbr.rel (0) target = $region25
    $region24: #{tpu_custom_call.1} parent=1 // pred_region
      %51 = dma.done [#allocation6], 64
    $region25: #{tpu_custom_call.1} parent=1 // pred_fallthru
      _
    %v52 = vld [vmem:[#allocation2] sm:$0xff]
    %v53 = vld [vmem:[#allocation5] sm:$0xff]
    %v54 = vld [vmem:[#allocation5 + $0x8] sm:$0xff]
    %v55 = vld [vmem:[#allocation5 + $0x10] sm:$0xff]
    %v56 = vld [vmem:[#allocation5 + $0x18] sm:$0xff]
    %v57 = vld [vmem:[#allocation5 + $0x20] sm:$0xff]
    %v58 = vld [vmem:[#allocation5 + $0x28] sm:$0xff]
    %v59 = vld [vmem:[#allocation5 + $0x30] sm:$0xff]
    %v60 = vld [vmem:[#allocation5 + $0x38] sm:$0xff]
    %v61 = vld [vmem:[#allocation5 + $0x40] sm:$0xff]
    %v62 = vld [vmem:[#allocation5 + $0x48] sm:$0xff]
    %v63 = vld [vmem:[#allocation5 + $0x50] sm:$0xff]
    %v64 = vld [vmem:[#allocation5 + $0x58] sm:$0xff]
    %v65 = vld [vmem:[#allocation5 + $0x60] sm:$0xff]
    %v66 = vld [vmem:[#allocation5 + $0x68] sm:$0xff]
    %v67 = vld [vmem:[#allocation5 + $0x70] sm:$0xff]
    %v68 = vld [vmem:[#allocation5 + $0x78] sm:$0xff]
    %v69 = vld [vmem:[#allocation5 + $0x80] sm:$0xff]
    %v70 = vld [vmem:[#allocation5 + $0x88] sm:$0xff]
    %v71 = vld [vmem:[#allocation5 + $0x90] sm:$0xff]
    %v72 = vld [vmem:[#allocation5 + $0x98] sm:$0xff]
    %v73 = vld [vmem:[#allocation5 + $0xa0] sm:$0xff]
    %v74 = vld [vmem:[#allocation5 + $0xa8] sm:$0xff]
    %v75 = vld [vmem:[#allocation5 + $0xb0] sm:$0xff]
    %v76 = vld [vmem:[#allocation5 + $0xb8] sm:$0xff]
    %v77 = vld [vmem:[#allocation5 + $0xc0] sm:$0xff]
    %v78 = vld [vmem:[#allocation5 + $0xc8] sm:$0xff]
    %v79 = vld [vmem:[#allocation5 + $0xd0] sm:$0xff]
    %v80 = vld [vmem:[#allocation5 + $0xd8] sm:$0xff]
    %v81 = vld [vmem:[#allocation5 + $0xe0] sm:$0xff]
    %v82 = vld [vmem:[#allocation5 + $0xe8] sm:$0xff]
    %v83 = vld [vmem:[#allocation5 + $0xf0] sm:$0xff]
    %v84 = vld [vmem:[#allocation5 + $0xf8] sm:$0xff]
    %v85 = vld [vmem:[#allocation5 + $0x100] sm:$0xff]
    %v86 = vld [vmem:[#allocation5 + $0x108] sm:$0xff]
    %v87 = vld [vmem:[#allocation5 + $0x110] sm:$0xff]
    %v88 = vld [vmem:[#allocation5 + $0x118] sm:$0xff]
    %v89 = vld [vmem:[#allocation5 + $0x120] sm:$0xff]
    %v90 = vld [vmem:[#allocation5 + $0x128] sm:$0xff]
    %v91 = vld [vmem:[#allocation5 + $0x130] sm:$0xff]
    %v92 = vld [vmem:[#allocation5 + $0x138] sm:$0xff]
    %v93 = vld [vmem:[#allocation5 + $0x140] sm:$0xff]
    %v94 = vld [vmem:[#allocation5 + $0x148] sm:$0xff]
    %v95 = vld [vmem:[#allocation5 + $0x150] sm:$0xff]
    %v96 = vld [vmem:[#allocation5 + $0x158] sm:$0xff]
    %v97 = vld [vmem:[#allocation5 + $0x160] sm:$0xff]
    %v98 = vld [vmem:[#allocation5 + $0x168] sm:$0xff]
    %v99 = vld [vmem:[#allocation5 + $0x170] sm:$0xff]
    %v100 = vld [vmem:[#allocation5 + $0x178] sm:$0xff]
    %v101 = vld [vmem:[#allocation5 + $0x180] sm:$0xff]
    %v102 = vld [vmem:[#allocation5 + $0x188] sm:$0xff]
    %v103 = vld [vmem:[#allocation5 + $0x190] sm:$0xff]
    %v104 = vld [vmem:[#allocation5 + $0x198] sm:$0xff]
    %v105 = vld [vmem:[#allocation5 + $0x1a0] sm:$0xff]
    %v106 = vld [vmem:[#allocation5 + $0x1a8] sm:$0xff]
    %v107 = vld [vmem:[#allocation5 + $0x1b0] sm:$0xff]
    %v108 = vld [vmem:[#allocation5 + $0x1b8] sm:$0xff]
    %v109 = vld [vmem:[#allocation5 + $0x1c0] sm:$0xff]
    %v110 = vld [vmem:[#allocation5 + $0x1c8] sm:$0xff]
    %v111 = vld [vmem:[#allocation5 + $0x1d0] sm:$0xff]
    %v112 = vld [vmem:[#allocation5 + $0x1d8] sm:$0xff]
    %v113 = vld [vmem:[#allocation5 + $0x1e0] sm:$0xff]
    %v114 = vld [vmem:[#allocation5 + $0x1e8] sm:$0xff]
    %v115 = vld [vmem:[#allocation5 + $0x1f0] sm:$0xff]
    %v116 = vld [vmem:[#allocation5 + $0x1f8] sm:$0xff]
    %v117 = vld [vmem:[#allocation7] sm:$0xf]
    %v119 = vlaneseq
    %v120 = vshrl.u32 %v119, 7
    %v121 = vsub.s32 0, %v120
    %v122 = vrot.slane %v117, %v121
    %v123 = vlaneseq
    %v124 = vshrl.u32 %v123, 7
    %v125 = vsub.s32 1, %v124
    %v126 = vrot.slane %v117, %v125
    %v127 = vlaneseq
    %v128 = vshrl.u32 %v127, 7
    %v129 = vsub.s32 2, %v128
    %v130 = vrot.slane %v117, %v129
    %v131 = vlaneseq
    %v132 = vshrl.u32 %v131, 7
    %v133 = vsub.s32 3, %v132
    %v134 = vrot.slane %v117, %v133
    %139 = vmatprep.subr.mxu0 %v114
    %140 = vmatpush1.msra.mxu0 %v113
    %141 = vmatprep.subr.mxu0 %v110
    %142 = vmatpush1.msra.mxu0 %v109
    %143 = vmatprep.subr.mxu0 %v106
    %144 = vmatpush1.msra.mxu0 %v105
    %145 = vmatprep.subr.mxu0 %v102
    %146 = vmatpush1.msra.mxu0 %v101
    %147 = vmatprep.subr.mxu0 %v98
    %148 = vmatpush1.msra.mxu0 %v97
    %149 = vmatprep.subr.mxu0 %v94
    %150 = vmatpush1.msra.mxu0 %v93
    %151 = vmatprep.subr.mxu0 %v90
    %152 = vmatpush1.msra.mxu0 %v89
    %153 = vmatprep.subr.mxu0 %v86
    %154 = vmatpush1.msra.mxu0 %v85
    %155 = vmatprep.subr.mxu0 %v82
    %156 = vmatpush1.msra.mxu0 %v81
    %157 = vmatprep.subr.mxu0 %v78
    %158 = vmatpush1.msra.mxu0 %v77
    %159 = vmatprep.subr.mxu0 %v74
    %160 = vmatpush1.msra.mxu0 %v73
    %161 = vmatprep.subr.mxu0 %v70
    %162 = vmatpush1.msra.mxu0 %v69
    %163 = vmatprep.subr.mxu0 %v66
    %164 = vmatpush1.msra.mxu0 %v65
    %165 = vmatprep.subr.mxu0 %v62
    %166 = vmatpush1.msra.mxu0 %v61
    %167 = vmatprep.subr.mxu0 %v58
    %168 = vmatpush1.msra.mxu0 %v57
    %169 = vmatprep.subr.mxu0 %v54
    %170 = vmatpush1.msra.mxu0 %v53
    %171 = vmatprep.subr.mxu0 0.0
    %172 = vmatpush2.msra.mxu0 0.0
    %173 = vmatprep.subr.mxu0 0.0
    %174 = vmatpush2.msra.mxu0 0.0
    %175 = vmatprep.subr.mxu0 0.0
    %176 = vmatpush2.msra.mxu0 0.0
    %177 = vmatprep.subr.mxu0 0.0
    %178 = vmatpush2.msra.mxu0 0.0
    %179 = vmatprep.subr.mxu0 0.0
    %180 = vmatpush2.msra.mxu0 0.0
    %181 = vmatprep.subr.mxu0 0.0
    %182 = vmatpush2.msra.mxu0 0.0
    %183 = vmatprep.subr.mxu0 0.0
    %184 = vmatpush2.msra.mxu0 0.0
    %185 = vmatprep.subr.mxu0 0.0
    %186 = vmatpush2.msra.mxu0 0.0
    %187 = vmatprep.subr.mxu0 0.0
    %188 = vmatpush2.msra.mxu0 0.0
    %189 = vmatprep.subr.mxu0 0.0
    %190 = vmatpush2.msra.mxu0 0.0
    %191 = vmatprep.subr.mxu0 0.0
    %192 = vmatpush2.msra.mxu0 0.0
    %193 = vmatprep.subr.mxu0 0.0
    %194 = vmatpush2.msra.mxu0 0.0
    %195 = vmatprep.subr.mxu0 0.0
    %196 = vmatpush2.msra.mxu0 0.0
    %197 = vmatprep.subr.mxu0 0.0
    %198 = vmatpush2.msra.mxu0 0.0
    %199 = vmatprep.subr.mxu0 0.0
    %200 = vmatpush2.msra.mxu0 0.0
    %201 = vmatprep.subr.mxu0 0.0
    %202 = vmatpush2.msra.mxu0 0.0
    %203 = vmatprep.mubr.f32.mxu0 0.0
    %204 = vmatmul.mubr.f32.gmra.mxu0 %v52
    %v205 = vpop.f32.mrf.mxu0
    %v206 = vadd.f32 %v122, %v205
    %v207 = vpop.f32.mrf.mxu0
    %v208 = vadd.f32 %v126, %v207
    %209 = vdwg.mxu0
    %210 = vmatprep.subr.mxu0 %v116
    %211 = vmatpush1.msra.mxu0 %v115
    %212 = vmatprep.subr.mxu0 %v112
    %213 = vmatpush1.msra.mxu0 %v111
    %214 = vmatprep.subr.mxu0 %v108
    %215 = vmatpush1.msra.mxu0 %v107
    %216 = vmatprep.subr.mxu0 %v104
    %217 = vmatpush1.msra.mxu0 %v103
    %218 = vmatprep.subr.mxu0 %v100
    %219 = vmatpush1.msra.mxu0 %v99
    %220 = vmatprep.subr.mxu0 %v96
    %221 = vmatpush1.msra.mxu0 %v95
    %222 = vmatprep.subr.mxu0 %v92
    %223 = vmatpush1.msra.mxu0 %v91
    %224 = vmatprep.subr.mxu0 %v88
    %225 = vmatpush1.msra.mxu0 %v87
    %226 = vmatprep.subr.mxu0 %v84
    %227 = vmatpush1.msra.mxu0 %v83
    %228 = vmatprep.subr.mxu0 %v80
    %229 = vmatpush1.msra.mxu0 %v79
    %230 = vmatprep.subr.mxu0 %v76
    %231 = vmatpush1.msra.mxu0 %v75
    %232 = vmatprep.subr.mxu0 %v72
    %233 = vmatpush1.msra.mxu0 %v71
    %234 = vmatprep.subr.mxu0 %v68
    %235 = vmatpush1.msra.mxu0 %v67
    %236 = vmatprep.subr.mxu0 %v64
    %237 = vmatpush1.msra.mxu0 %v63
    %238 = vmatprep.subr.mxu0 %v60
    %239 = vmatpush1.msra.mxu0 %v59
    %240 = vmatprep.subr.mxu0 %v56
    %241 = vmatpush1.msra.mxu0 %v55
    %242 = vmatprep.subr.mxu0 0.0
    %243 = vmatpush2.msra.mxu0 0.0
    %244 = vmatprep.subr.mxu0 0.0
    %245 = vmatpush2.msra.mxu0 0.0
    %246 = vmatprep.subr.mxu0 0.0
    %247 = vmatpush2.msra.mxu0 0.0
    %248 = vmatprep.subr.mxu0 0.0
    %249 = vmatpush2.msra.mxu0 0.0
    %250 = vmatprep.subr.mxu0 0.0
    %251 = vmatpush2.msra.mxu0 0.0
    %252 = vmatprep.subr.mxu0 0.0
    %253 = vmatpush2.msra.mxu0 0.0
    %254 = vmatprep.subr.mxu0 0.0
    %255 = vmatpush2.msra.mxu0 0.0
    %256 = vmatprep.subr.mxu0 0.0
    %257 = vmatpush2.msra.mxu0 0.0
    %258 = vmatprep.subr.mxu0 0.0
    %259 = vmatpush2.msra.mxu0 0.0
    %260 = vmatprep.subr.mxu0 0.0
    %261 = vmatpush2.msra.mxu0 0.0
    %262 = vmatprep.subr.mxu0 0.0
    %263 = vmatpush2.msra.mxu0 0.0
    %264 = vmatprep.subr.mxu0 0.0
    %265 = vmatpush2.msra.mxu0 0.0
    %266 = vmatprep.subr.mxu0 0.0
    %267 = vmatpush2.msra.mxu0 0.0
    %268 = vmatprep.subr.mxu0 0.0
    %269 = vmatpush2.msra.mxu0 0.0
    %270 = vmatprep.subr.mxu0 0.0
    %271 = vmatpush2.msra.mxu0 0.0
    %272 = vmatprep.subr.mxu0 0.0
    %273 = vmatpush2.msra.mxu0 0.0
    %274 = vmatprep.mubr.f32.mxu0 0.0
    %275 = vmatmul.mubr.f32.gmra.mxu0 %v52
    %v276 = vpop.f32.mrf.mxu0
    %v277 = vadd.f32 %v130, %v276
    %v278 = vpop.f32.mrf.mxu0
    %v279 = vadd.f32 %v134, %v278
    %280 = vdwg.mxu0
    %281 = vst [vmem:[#allocation8] sm:$0xff] %v206
    %282 = vst [vmem:[#allocation8 + $0x8] sm:$0xff] %v208
    %283 = vst [vmem:[#allocation8 + $0x10] sm:$0xff] %v277
    %284 = vst [vmem:[#allocation8 + $0x18] sm:$0xff] %v279
    // Predicated region
    $region26: #{tpu_custom_call.1} parent=1 // pred_check
      _
    $region27: #{tpu_custom_call.1} parent=1 // pred_check_branch
      %286 = sbr.rel (0) target = $region29
    $region28: #{tpu_custom_call.1} parent=1 // pred_region
      %s288 = ssub.s32 512, 512
      %289 = vsyncadd [#allocation4], %s288
      %s291 = sshll.u32 [#allocation8], 4
      %s292 = int_to_ptr.vmem [resolvable:$true] %s291
      %294 = dma.vmem_to_hbm [thread:$0]  %s292, 512, %s3, [#allocation4]
    $region29: #{tpu_custom_call.1} parent=1 // pred_fallthru
      _
    // Predicated region
    $region30: #{tpu_custom_call.1} parent=1 // pred_check
      _
    $region31: #{tpu_custom_call.1} parent=1 // pred_check_branch
      %296 = sbr.rel (0) target = $region33
    $region32: #{tpu_custom_call.1} parent=1 // pred_region
      %297 = dma.done [#allocation4], 512
    $region33: #{tpu_custom_call.1} parent=1 // pred_fallthru
      _
    %298 = vsyncpa [#allocation3], 1
    %299 = vsyncpa [#allocation6], 1
    %300 = vsyncpa [#allocation4], 1

</llo_original>
